<compile_context>
chip_gen: v7x
topology: tpu7x:2x2x1
jax: 0.10.0
libtpu: 0.0.40
codegen_flags: <defaults>
</compile_context>

<pallas_src>
import functools

import jax
import jax.numpy as jnp
from jax.experimental import pallas as pl
from jax.experimental.pallas import tpu as pltpu


def _graphconv_kernel(*refs, add_self, normalize_embedding, use_bias):
    it = iter(refs)
    x_ref = next(it)                              # (Bt, N,  Din)  full node rows
    adj_ref = next(it)                            # (Bt, tN, N)    adjacency row tile
    x_rows_ref = next(it) if add_self else None   # (Bt, tN, Din)  same rows as adj tile
    wf_ref = next(it)                             # (Din, Dout)    fused Wlin^T @ W
    bf_ref = next(it)                             # (1, Dout)      fused blin @ W (f32)
    b_ref = next(it) if use_bias else None        # (1, Dout)      output bias   (f32)
    o_ref = next(it)                              # (Bt, tN, Dout)

    x = x_ref[...]
    adj = adj_ref[...]
    wf = wf_ref[...]
    bf = bf_ref[...].astype(jnp.float32)

    # Aggregation: z[b] = adj[b] @ x[b]  (batched, MXU, f32 accumulation).
    z = jnp.einsum("bkn,bnd->bkd", adj, x, preferred_element_type=jnp.float32)

    # rowsum(adj) carries the folded linear bias through the aggregation (XLU).
    deg = jnp.sum(adj.astype(jnp.float32), axis=-1, keepdims=True)  # (Bt, tN, 1)

    if add_self:
        z = z + x_rows_ref[...].astype(jnp.float32)
        deg = deg + 1.0

    # Projection with the pre-fused weight; Bt*tN rows fill the MXU.
    y = jnp.einsum("bkd,de->bke", z.astype(wf.dtype), wf,
                   preferred_element_type=jnp.float32)              # (Bt, tN, Dout)

    y = y + deg * bf
    if use_bias:
        y = y + b_ref[...].astype(jnp.float32)

    if normalize_embedding:
        # F.normalize(y, p=2, dim=2): y / max(||y||, 1e-12) == y * rsqrt(max(sumsq, 1e-24))
        sumsq = jnp.sum(y * y, axis=-1, keepdims=True)              # XLU
        y = y * jax.lax.rsqrt(jnp.maximum(sumsq, 1e-24))            # EUP

    o_ref[...] = y.astype(o_ref.dtype)


def graph_conv(x, adj, wlin, blin, w, b, *,
               add_self=False, normalize_embedding=False,
               batch_tile=None, row_tile=None,
               compute_dtype=None, vmem_limit_bytes=None):
    """x: (B, N, Din)  adj: (B, N, N)  -> (B, N, Dout).

    wlin: (Din, Din) nn.Linear weight (applied as x @ wlin.T), blin: (1, Din) or (Din,)
    w:    (Din, Dout) graph weight,                            b:    (1, Dout)/(Dout,)/None
    """
    B, N, Din = x.shape
    Dout = w.shape[-1]
    use_bias = b is not None
    out_dtype = x.dtype
    f32 = jnp.float32

    # ---- host-side algebraic fusion (done once, outside the grid loop) ----
    w_fused = jnp.dot(wlin.astype(f32).T, w.astype(f32))                 # (Din, Dout)
    b_fold = jnp.dot(blin.astype(f32).reshape(1, Din), w.astype(f32))    # (1, Dout)

    if compute_dtype is None:
        compute_dtype = x.dtype
    xc = x.astype(compute_dtype)
    adjc = adj.astype(compute_dtype)
    wfc = w_fused.astype(compute_dtype)

    # ---- tiling ------------------------------------------------------------
    if row_tile is None:
        row_tile = N
    assert N % row_tile == 0
    assert row_tile == N or row_tile % 8 == 0, "row_tile must be a multiple of 8"

    itemsize = jnp.dtype(compute_dtype).itemsize
    out_itemsize = jnp.dtype(out_dtype).itemsize

    def _step_bytes(bt):
        xb = bt * N * Din * itemsize
        adjb = bt * row_tile * N * itemsize
        xrb = bt * row_tile * Din * itemsize if add_self else 0
        ob = bt * row_tile * Dout * out_itemsize
        return 2 * (xb + adjb + xrb + ob)   # double-buffered pipeline

    if batch_tile is None:
        budget = 8 * 1024 * 1024            # conservative vs 16 MiB v5e scoped default
        cap = max(1, B // 2)                # keep >=2 batch steps for megacore (v7x)
        batch_tile = 1
        for bt in range(cap, 0, -1):
            if B % bt == 0 and _step_bytes(bt) <= budget:
                batch_tile = bt
                break
    assert B % batch_tile == 0

    grid = (B // batch_tile, N // row_tile)

    in_specs = [
        # full node rows of x, reused (kept resident) across all row tiles
        pl.BlockSpec((batch_tile, N, Din), lambda bi, ri: (bi, 0, 0)),
        # adjacency row tile
        pl.BlockSpec((batch_tile, row_tile, N), lambda bi, ri: (bi, ri, 0)),
    ]
    args = [xc, adjc]
    if add_self:
        in_specs.append(
            pl.BlockSpec((batch_tile, row_tile, Din), lambda bi, ri: (bi, ri, 0)))
        args.append(xc)
    in_specs += [
        pl.BlockSpec((Din, Dout), lambda bi, ri: (0, 0)),   # fused weight
        pl.BlockSpec((1, Dout), lambda bi, ri: (0, 0)),     # fused linear bias
    ]
    args += [wfc, b_fold]
    if use_bias:
        in_specs.append(pl.BlockSpec((1, Dout), lambda bi, ri: (0, 0)))
        args.append(b.astype(f32).reshape(1, Dout))

    out_specs = pl.BlockSpec((batch_tile, row_tile, Dout),
                             lambda bi, ri: (bi, ri, 0))

    kernel = functools.partial(
        _graphconv_kernel,
        add_self=add_self,
        normalize_embedding=normalize_embedding,
        use_bias=use_bias,
    )

    return pl.pallas_call(
        kernel,
        out_shape=jax.ShapeDtypeStruct((B, N, Dout), out_dtype),
        grid_spec=pltpu.PrefetchScalarGridSpec(
            num_scalar_prefetch=0,
            grid=grid,
            in_specs=in_specs,
            out_specs=out_specs,
        ),
        compiler_params=pltpu.CompilerParams(
            dimension_semantics=("parallel", "parallel"),
            vmem_limit_bytes=vmem_limit_bytes,
        ),
    )(*args)


def _reference(x, adj, wlin, blin, w, b,
               add_self=False, normalize_embedding=False):
    """Unfused f32 reference matching the original PyTorch forward."""
    h = jnp.einsum("bnd,ed->bne", x, wlin) + blin.reshape(1, 1, -1)
    y = jnp.einsum("bnm,bmd->bnd", adj, h)
    if add_self:
        y = y + h
    y = jnp.einsum("bnd,de->bne", y, w)
    if b is not None:
        y = y + b.reshape(1, 1, -1)
    if normalize_embedding:
        y = y / jnp.maximum(jnp.linalg.norm(y, axis=-1, keepdims=True), 1e-12)
    return y


if __name__ == "__main__":
    # Small shapes: batch=4 graphs, 16 nodes, input_dim=32, output_dim=32.
    B, N, Din, Dout = 4, 16, 32, 32

    key = jax.random.PRNGKey(0)
    kx, kadj, k1, k2, k3, k4 = jax.random.split(key, 6)

    x = jax.random.normal(kx, (B, N, Din), jnp.float32)
    adj = jax.random.uniform(kadj, (B, N, N), jnp.float32)

    # Parameter shapes match the module __init__:
    #   nn.Linear(input_dim, input_dim): weight (Din, Din), bias (Din,)
    #   self.weight: (Din, Dout), self.bias: (Dout,)
    wlin = jax.random.normal(k1, (Din, Din), jnp.float32) * 0.1
    blin = jax.random.normal(k2, (1, Din), jnp.float32) * 0.1
    w = jax.random.normal(k3, (Din, Dout), jnp.float32) * 0.1
    b = jax.random.normal(k4, (1, Dout), jnp.float32) * 0.1

    # 1) default path (f32, fused weights, batch-tiled grid)
    out = jax.block_until_ready(graph_conv(x, adj, wlin, blin, w, b))
    ref = _reference(x, adj, wlin, blin, w, b)
    assert out.shape == (B, N, Dout)
    assert jnp.allclose(out, ref, atol=1e-4, rtol=1e-4), "mismatch (default path)"

    # 2) add_self + normalize_embedding, no output bias (exercise all branches)
    out2 = jax.block_until_ready(
        graph_conv(x, adj, wlin, blin, w, None,
                   add_self=True, normalize_embedding=True))
    ref2 = _reference(x, adj, wlin, blin, w, None,
                      add_self=True, normalize_embedding=True)
    assert jnp.allclose(out2, ref2, atol=1e-4, rtol=1e-4), "mismatch (add_self/normalize)"

    # 3) bf16 compute path (f32 accumulation) -- looser tolerance
    out3 = jax.block_until_ready(
        graph_conv(x, adj, wlin, blin, w, b, compute_dtype=jnp.bfloat16))
    assert jnp.allclose(out3, ref, atol=5e-2, rtol=5e-2), "mismatch (bf16 path)"

    print("KERNEL_OK")
</pallas_src>

<mosaic_0001>
module attributes {stable_mosaic.version = 11 : i64} {
  func.func @_graphconv_kernel(%arg0: i32, %arg1: i32, %arg2: memref<2x16x32xf32, #tpu.memory_space<vmem>>, %arg3: memref<2x16x16xf32, #tpu.memory_space<vmem>>, %arg4: memref<32x32xf32, #tpu.memory_space<vmem>>, %arg5: memref<1x32xf32, #tpu.memory_space<vmem>>, %arg6: memref<1x32xf32, #tpu.memory_space<vmem>>, %arg7: memref<2x16x32xf32, #tpu.memory_space<vmem>>) attributes {dimension_semantics = [#tpu.dimension_semantics<parallel>, #tpu.dimension_semantics<parallel>], iteration_bounds = array<i64: 2, 1>, scalar_prefetch = 0 : i64, scratch_operands = 0 : i64, tpu.core_type = #tpu.core_type<tc>, window_params = [{transform_indices = @transform_0, window_bounds = array<i64: 2, 16, 32>}, {transform_indices = @transform_1, window_bounds = array<i64: 2, 16, 16>}, {pipeline_mode = #tpu.pipeline_mode<synchronous>, transform_indices = @transform_2, window_bounds = array<i64: 32, 32>}, {pipeline_mode = #tpu.pipeline_mode<synchronous>, transform_indices = @transform_3, window_bounds = array<i64: 1, 32>}, {pipeline_mode = #tpu.pipeline_mode<synchronous>, transform_indices = @transform_4, window_bounds = array<i64: 1, 32>}, {transform_indices = @transform_5, window_bounds = array<i64: 2, 16, 32>}]} {
    %c0 = arith.constant 0 : index
    %c0_0 = arith.constant 0 : index
    %c0_1 = arith.constant 0 : index
    %0 = vector.load %arg2[%c0, %c0_0, %c0_1] : memref<2x16x32xf32, #tpu.memory_space<vmem>>, vector<2x16x32xf32>
    %c0_2 = arith.constant 0 : index
    %c0_3 = arith.constant 0 : index
    %c0_4 = arith.constant 0 : index
    %1 = vector.load %arg3[%c0_2, %c0_3, %c0_4] : memref<2x16x16xf32, #tpu.memory_space<vmem>>, vector<2x16x16xf32>
    %c0_5 = arith.constant 0 : index
    %c0_6 = arith.constant 0 : index
    %2 = vector.load %arg4[%c0_5, %c0_6] : memref<32x32xf32, #tpu.memory_space<vmem>>, vector<32x32xf32>
    %c0_7 = arith.constant 0 : index
    %c0_8 = arith.constant 0 : index
    %3 = vector.load %arg5[%c0_7, %c0_8] : memref<1x32xf32, #tpu.memory_space<vmem>>, vector<1x32xf32>
    "tpu.trace_start"() <{level = 10 : i32, message = "bkn,bnd->bkd"}> : () -> ()
    %cst = arith.constant dense<0.000000e+00> : vector<2x16x32xf32>
    %4 = tpu.matmul %1, %0, %cst {dimension_numbers = #tpu.dot_dimension_numbers<[2], [1], [1], [2], [0, 0, 0, 1, 1, 2], [0], [0]>} : vector<2x16x16xf32>, vector<2x16x32xf32>, vector<2x16x32xf32> -> vector<2x16x32xf32>
    "tpu.trace_stop"() : () -> ()
    %cst_9 = arith.constant dense<0.000000e+00> : vector<2x16xf32>
    %5 = vector.multi_reduction <add>, %1, %cst_9 [2] : vector<2x16x16xf32> to vector<2x16xf32>
    %6 = vector.shape_cast %5 : vector<2x16xf32> to vector<2x16x1xf32>
    "tpu.trace_start"() <{level = 10 : i32, message = "bkd,de->bke"}> : () -> ()
    %cst_10 = arith.constant dense<0.000000e+00> : vector<2x16x32xf32>
    %7 = tpu.matmul %4, %2, %cst_10 {dimension_numbers = #tpu.dot_dimension_numbers<[2], [0], [0, 1], [1], [0, 0, 0, 1, 1, 1], [], []>} : vector<2x16x32xf32>, vector<32x32xf32>, vector<2x16x32xf32> -> vector<2x16x32xf32>
    "tpu.trace_stop"() : () -> ()
    %8 = vector.shape_cast %3 : vector<1x32xf32> to vector<1x1x32xf32>
    %9 = vector.broadcast %6 : vector<2x16x1xf32> to vector<2x16x32xf32>
    %10 = vector.broadcast %8 : vector<1x1x32xf32> to vector<2x16x32xf32>
    %11 = arith.mulf %9, %10 : vector<2x16x32xf32>
    %12 = arith.addf %7, %11 : vector<2x16x32xf32>
    %c0_11 = arith.constant 0 : index
    %c0_12 = arith.constant 0 : index
    %13 = vector.load %arg6[%c0_11, %c0_12] : memref<1x32xf32, #tpu.memory_space<vmem>>, vector<1x32xf32>
    %14 = vector.shape_cast %13 : vector<1x32xf32> to vector<1x1x32xf32>
    %15 = vector.broadcast %14 : vector<1x1x32xf32> to vector<2x16x32xf32>
    %16 = arith.addf %12, %15 : vector<2x16x32xf32>
    %c0_13 = arith.constant 0 : index
    %c0_14 = arith.constant 0 : index
    %c0_15 = arith.constant 0 : index
    %17 = vector.load %arg7[%c0_13, %c0_14, %c0_15] : memref<2x16x32xf32, #tpu.memory_space<vmem>>, vector<2x16x32xf32>
    tpu.vector_store %arg7[%c0_13, %c0_14, %c0_15], %16 {strides = array<i32>} : memref<2x16x32xf32, #tpu.memory_space<vmem>>, vector<2x16x32xf32>,
    return
  }
  func.func @transform_0(%arg0: i32, %arg1: i32) -> (i32, i32, i32) {
    %c0_i32 = arith.constant 0 : i32
    %c0_i32_0 = arith.constant 0 : i32
    %c0_i32_1 = arith.constant 0 : i32
    return %arg0, %c0_i32, %c0_i32_0 : i32, i32, i32
  }
  func.func @transform_1(%arg0: i32, %arg1: i32) -> (i32, i32, i32) {
    %c0_i32 = arith.constant 0 : i32
    %c0_i32_0 = arith.constant 0 : i32
    return %arg0, %arg1, %c0_i32 : i32, i32, i32
  }
  func.func @transform_2(%arg0: i32, %arg1: i32) -> (i32, i32) {
    %c0_i32 = arith.constant 0 : i32
    %c0_i32_0 = arith.constant 0 : i32
    %c0_i32_1 = arith.constant 0 : i32
    return %c0_i32, %c0_i32_0 : i32, i32
  }
  func.func @transform_3(%arg0: i32, %arg1: i32) -> (i32, i32) {
    %c0_i32 = arith.constant 0 : i32
    %c0_i32_0 = arith.constant 0 : i32
    %c0_i32_1 = arith.constant 0 : i32
    return %c0_i32, %c0_i32_0 : i32, i32
  }
  func.func @transform_4(%arg0: i32, %arg1: i32) -> (i32, i32) {
    %c0_i32 = arith.constant 0 : i32
    %c0_i32_0 = arith.constant 0 : i32
    %c0_i32_1 = arith.constant 0 : i32
    return %c0_i32, %c0_i32_0 : i32, i32
  }
  func.func @transform_5(%arg0: i32, %arg1: i32) -> (i32, i32, i32) {
    %c0_i32 = arith.constant 0 : i32
    %c0_i32_0 = arith.constant 0 : i32
    return %arg0, %arg1, %c0_i32 : i32, i32, i32
  }
}

</mosaic_0001>

<llo_original>
// kernel: tpu_custom_call.1
$region0: #{tpu_custom_call.1}
  #allocation0 [shape = 'u32[]', space=smem, size = 0x4, offset = 0x4, fixed_abs, tag = 'smem constant byte address 0x4 - core index']
  #allocation1 [shape = 'u32[144,128]{1,0:T(1,128)}', space=vmem, size = 0x12000, scoped, tag = 'internal scratch']
  %s0 = inlined_call_operand.hbm [shape: f32[4,16,32], index: 0, kind: input, shape index: {}]
  %s1 = inlined_call_operand.hbm [shape: f32[4,16,16], index: 1, kind: input, shape index: {}]
  %s2 = inlined_call_operand.hbm [shape: f32[32,32], index: 2, kind: input, shape index: {}]
  %s3 = inlined_call_operand.vmem [shape: f32[1,32], index: 3, kind: input, shape index: {}]
  %s4 = inlined_call_operand.vmem [shape: f32[1,32], index: 4, kind: input, shape index: {}]
  %s5 = inlined_call_operand.hbm [shape: f32[4,16,32], index: 5, kind: output, shape index: {}]
  %s6 = sld [smem:[#allocation0]]
  $region65: #{tpu_custom_call.1} parent=0
    _
  %s8 = ssub.s32 1, %s6
  %s9 = scalar_select 0, %s8, %s6
  $region1: #{tpu_custom_call.1} parent=0
    #allocation2 [shape = 'u8[32768]{0}', space=vmem, size = 0x8000, scoped, tag = 'input window, operand 0']
    #allocation3 [shape = 's32[2]{0}', space=sflag, size = 0x8, scoped, tag = 'scoped memory for tpu_custom_call.1']
    #allocation4 [shape = 's32[2]{0}', space=sflag, size = 0x8, scoped, tag = 'scoped memory for tpu_custom_call.1']
    #allocation5 [shape = 'u8[32768]{0}', space=vmem, size = 0x8000, scoped, tag = 'input window, operand 1']
    #allocation6 [shape = 's32[2]{0}', space=sflag, size = 0x8, scoped, tag = 'scoped memory for tpu_custom_call.1']
    #allocation7 [shape = 'u8[16384]{0}', space=vmem, size = 0x4000, scoped, tag = 'input window, operand 2, single buffered']
    #allocation8 [shape = 'u8[32768]{0}', space=vmem, size = 0x8000, scoped, tag = 'output window, operand 0']
    %10 = vsyncpa [#allocation3], 0
    %s11 = scalar_lea.sflag [#allocation3], 1
    %12 = vsyncpa %s11, 0
    %13 = vsyncpa [#allocation6], 0
    %s14 = scalar_lea.sflag [#allocation6], 1
    %15 = vsyncpa %s14, 0
    %16 = vsyncpa [#allocation4], 0
    %s17 = scalar_lea.sflag [#allocation4], 1
    %18 = vsyncpa %s17, 0
    loop: start=0, step=1, limit=4
    $region2: #{tpu_custom_call.1} parent=1 // loop_pre_header
      _
    $region3: #{tpu_custom_call.1} parent=1 // loop_header
      %s20 = sphi 0, %s24
      %p21 = scmp.ge.s32.totalorder %s20, 4
      %s27 = sphi 0, %s39
      %s28 = sphi 0, %s35
      %s29 = sphi 0, %s27
      %s30 = sphi 0, %s28
      %s31 = sphi 0, %s29
      %s32 = sphi 0, %s30
      %s42 = sphi 0, %s44
      %s45 = sphi 0, %s42
      %s46 = sphi 0, %s45
      %s62 = sphi 0, %s46
      %s70 = sphi 0, %s72
      %s73 = sphi 0, %s70
      %s74 = sphi 0, %s73
      %s90 = sphi 0, %s74
      %s94 = sphi 0, %s94
      %s96 = sphi 0, %s94
      %s97 = sphi 0, %s96
      %s111 = sphi 0, %s97
      %s115 = sphi 0, %s115
      %s117 = sphi 0, %s115
      %s118 = sphi 0, %s117
      %s132 = sphi 0, %s118
      %s136 = sphi 0, %s136
      %s138 = sphi 0, %s136
      %s139 = sphi 0, %s138
      %s153 = sphi 0, %s139
      %s161 = sphi 0, %s163
      %s164 = sphi 0, %s161
      %s165 = sphi 0, %s164
      %s181 = sphi 0, %s165
    $region4: #{tpu_custom_call.1} parent=1 // loop_header_branch
      %23 = sbr.rel (%p21) target = $region8
    $region5: #{tpu_custom_call.1} parent=1 // loop_body
      %s25 = ssub.s32 %s20, 1
      %s26 = ssub.s32 %s20, 2
      %s33 = sadd.s32 1, %s28
      %p34 = scmp.ge.s32.totalorder %s33, 1
      %s35 = scalar_select %p34, 0, %s33
      %s36 = sadd.s32 1, %s27
      %s37 = scalar_select %p34, %s36, %s27
      %p38 = scmp.ge.s32.totalorder %s37, 2
      %s39 = scalar_select %p38, 0, %s37
      %s40 = ssub.s32 %s27, %s39
      %p41 = scmp.eq.s32.totalorder %s40, 0
      %s43 = sadd.s32 %s42, 1
      %s44 = scalar_select %p41, %s42, %s43
      %p47 = pneg %p41
      %p48 = scmp.eq.s32.totalorder %s20, 1
      %p49 = por %p47, %p48
      %p50 = scmp.ne.s32.totalorder %s42, %s45
      %p51 = scmp.eq.s32.totalorder %s20, 0
      %p52 = por %p50, %p51
      %p53 = scmp.ne.s32.totalorder %s42, %s45
      %p54 = scmp.eq.s32.totalorder %s25, 1
      %p55 = por %p53, %p54
      %p56 = scmp.ne.s32.totalorder %s45, %s46
      %p57 = scmp.eq.s32.totalorder %s25, 0
      %p58 = por %p56, %p57
      %p59 = scmp.ne.s32.totalorder %s45, %s46
      %p60 = scmp.eq.s32.totalorder %s26, 1
      %p61 = por %p59, %p60
      %p63 = scmp.ne.s32.totalorder %s46, %s62
      %p64 = scmp.eq.s32.totalorder %s26, 0
      %p65 = por %p63, %p64
      %s66 = ssub.s32 %s27, %s39
      %s67 = ssub.s32 %s28, %s35
      %s68 = sor.u32 %s66, %s67
      %p69 = scmp.eq.s32.totalorder %s68, 0
      %s71 = sadd.s32 %s70, 1
      %s72 = scalar_select %p69, %s70, %s71
      %p75 = pneg %p69
      %p76 = scmp.eq.s32.totalorder %s20, 1
      %p77 = por %p75, %p76
      %p78 = scmp.ne.s32.totalorder %s70, %s73
      %p79 = scmp.eq.s32.totalorder %s20, 0
      %p80 = por %p78, %p79
      %p81 = scmp.ne.s32.totalorder %s70, %s73
      %p82 = scmp.eq.s32.totalorder %s25, 1
      %p83 = por %p81, %p82
      %p84 = scmp.ne.s32.totalorder %s73, %s74
      %p85 = scmp.eq.s32.totalorder %s25, 0
      %p86 = por %p84, %p85
      %p87 = scmp.ne.s32.totalorder %s73, %s74
      %p88 = scmp.eq.s32.totalorder %s26, 1
      %p89 = por %p87, %p88
      %p91 = scmp.ne.s32.totalorder %s74, %s90
      %p92 = scmp.eq.s32.totalorder %s26, 0
      %p93 = por %p91, %p92
      %s95 = sadd.s32 %s94, 1
      %p98 = scmp.eq.s32.totalorder %s20, 1
      %p99 = scmp.ne.s32.totalorder %s94, %s96
      %p100 = scmp.eq.s32.totalorder %s20, 0
      %p101 = por %p99, %p100
      %p102 = scmp.ne.s32.totalorder %s94, %s96
      %p103 = scmp.eq.s32.totalorder %s25, 1
      %p104 = por %p102, %p103
      %p105 = scmp.ne.s32.totalorder %s96, %s97
      %p106 = scmp.eq.s32.totalorder %s25, 0
      %p107 = por %p105, %p106
      %p108 = scmp.ne.s32.totalorder %s96, %s97
      %p109 = scmp.eq.s32.totalorder %s26, 1
      %p110 = por %p108, %p109
      %p112 = scmp.ne.s32.totalorder %s97, %s111
      %p113 = scmp.eq.s32.totalorder %s26, 0
      %p114 = por %p112, %p113
      %s116 = sadd.s32 %s115, 1
      %p119 = scmp.eq.s32.totalorder %s20, 1
      %p120 = scmp.ne.s32.totalorder %s115, %s117
      %p121 = scmp.eq.s32.totalorder %s20, 0
      %p122 = por %p120, %p121
      %p123 = scmp.ne.s32.totalorder %s115, %s117
      %p124 = scmp.eq.s32.totalorder %s25, 1
      %p125 = por %p123, %p124
      %p126 = scmp.ne.s32.totalorder %s117, %s118
      %p127 = scmp.eq.s32.totalorder %s25, 0
      %p128 = por %p126, %p127
      %p129 = scmp.ne.s32.totalorder %s117, %s118
      %p130 = scmp.eq.s32.totalorder %s26, 1
      %p131 = por %p129, %p130
      %p133 = scmp.ne.s32.totalorder %s118, %s132
      %p134 = scmp.eq.s32.totalorder %s26, 0
      %p135 = por %p133, %p134
      %s137 = sadd.s32 %s136, 1
      %p140 = scmp.eq.s32.totalorder %s20, 1
      %p141 = scmp.ne.s32.totalorder %s136, %s138
      %p142 = scmp.eq.s32.totalorder %s20, 0
      %p143 = por %p141, %p142
      %p144 = scmp.ne.s32.totalorder %s136, %s138
      %p145 = scmp.eq.s32.totalorder %s25, 1
      %p146 = por %p144, %p145
      %p147 = scmp.ne.s32.totalorder %s138, %s139
      %p148 = scmp.eq.s32.totalorder %s25, 0
      %p149 = por %p147, %p148
      %p150 = scmp.ne.s32.totalorder %s138, %s139
      %p151 = scmp.eq.s32.totalorder %s26, 1
      %p152 = por %p150, %p151
      %p154 = scmp.ne.s32.totalorder %s139, %s153
      %p155 = scmp.eq.s32.totalorder %s26, 0
      %p156 = por %p154, %p155
      %s157 = ssub.s32 %s27, %s39
      %s158 = ssub.s32 %s28, %s35
      %s159 = sor.u32 %s157, %s158
      %p160 = scmp.eq.s32.totalorder %s159, 0
      %s162 = sadd.s32 %s161, 1
      %s163 = scalar_select %p160, %s161, %s162
      %p166 = pneg %p160
      %p167 = scmp.eq.s32.totalorder %s20, 1
      %p168 = por %p166, %p167
      %p169 = scmp.ne.s32.totalorder %s161, %s164
      %p170 = scmp.eq.s32.totalorder %s20, 0
      %p171 = por %p169, %p170
      %p172 = scmp.ne.s32.totalorder %s161, %s164
      %p173 = scmp.eq.s32.totalorder %s25, 1
      %p174 = por %p172, %p173
      %p175 = scmp.ne.s32.totalorder %s164, %s165
      %p176 = scmp.eq.s32.totalorder %s25, 0
      %p177 = por %p175, %p176
      %p178 = scmp.ne.s32.totalorder %s164, %s165
      %p179 = scmp.eq.s32.totalorder %s26, 1
      %p180 = por %p178, %p179
      %p182 = scmp.ne.s32.totalorder %s165, %s181
      %p183 = scmp.eq.s32.totalorder %s26, 0
      %p184 = por %p182, %p183
      %p185 = scmp.le.s32.totalorder 1, %s20
      %p186 = scmp.lt.s32.totalorder %s20, 3
      %p187 = pnand %p185, %p186
      %p188 = pneg %p187
      // Predicated region
      $region9: #{tpu_custom_call.1} parent=5 // pred_check
        _
      $region10: #{tpu_custom_call.1} parent=5 // pred_check_branch
        %190 = sbr.rel (%p187) target = $region12
      $region11: #{tpu_custom_call.1} parent=5 // pred_region
        %s191 = ssub.s32 %s20, 1
        // Predicated region
        $region13: #{tpu_custom_call.1} parent=11 // pred_check
          %p192 = pneg %p107
        $region14: #{tpu_custom_call.1} parent=11 // pred_check_branch
          %194 = sbr.rel (%p192) target = $region16
        $region15: #{tpu_custom_call.1} parent=11 // pred_region
          %s196 = ssub.s32 512, 512
          %197 = vsyncadd [#allocation6], %s196
          %s198 = sshll.u32 [#allocation7], 4
          %s199 = int_to_ptr.vmem [resolvable:$true] %s198
          %204 = dma.hbm_to_vmem [thread:$0]  %s2, 512, %s199, [#allocation6], 128, 128, 8
        $region16: #{tpu_custom_call.1} parent=11 // pred_fallthru
          _
        // Predicated region
        $region17: #{tpu_custom_call.1} parent=11 // pred_check
          %p205 = pneg %p128
        $region18: #{tpu_custom_call.1} parent=11 // pred_check_branch
          %207 = sbr.rel (%p205) target = $region20
        $region19: #{tpu_custom_call.1} parent=11 // pred_region
          _
        $region20: #{tpu_custom_call.1} parent=11 // pred_fallthru
          _
        // Predicated region
        $region21: #{tpu_custom_call.1} parent=11 // pred_check
          %p208 = pneg %p149
        $region22: #{tpu_custom_call.1} parent=11 // pred_check_branch
          %210 = sbr.rel (%p208) target = $region24
        $region23: #{tpu_custom_call.1} parent=11 // pred_region
          _
        $region24: #{tpu_custom_call.1} parent=11 // pred_fallthru
          _
      $region12: #{tpu_custom_call.1} parent=5 // pred_fallthru
        _
      %p211 = scmp.lt.s32.totalorder %s20, 2
      // Predicated region
      $region25: #{tpu_custom_call.1} parent=5 // pred_check
        %p212 = pneg %p211
      $region26: #{tpu_custom_call.1} parent=5 // pred_check_branch
        %214 = sbr.rel (%p212) target = $region28
      $region27: #{tpu_custom_call.1} parent=5 // pred_region
        // Predicated region
        $region29: #{tpu_custom_call.1} parent=27 // pred_check
          %p215 = pneg %p52
        $region30: #{tpu_custom_call.1} parent=27 // pred_check_branch
          %217 = sbr.rel (%p215) target = $region32
        $region31: #{tpu_custom_call.1} parent=27 // pred_region
          %s218 = sand.u32 %s42, 1
          %s219 = scalar_lea.sflag [#allocation3], %s218
          %s220 = sand.u32 %s42, 1
          %s221 = smul.addr %s220, 32
          %s222 = scalar_lea.vmem [#allocation2], %s221
          %s223 = smul.u32 2, %s27
          %s225 = ssub.s32 512, 512
          %226 = vsyncadd %s219, %s225
          %s227 = smul.addr %s223, 2
          %s228 = smul.addr %s227, 128
          %s229 = scalar_lea.hbm %s0, %s228
          %s230 = sshll.u32 %s222, 4
          %s231 = int_to_ptr.vmem [resolvable:$true] %s230
          %236 = dma.hbm_to_vmem [thread:$0]  %s229, 512, %s231, %s219, 128, 128, 8
        $region32: #{tpu_custom_call.1} parent=27 // pred_fallthru
          _
        // Predicated region
        $region33: #{tpu_custom_call.1} parent=27 // pred_check
          %p237 = pneg %p80
        $region34: #{tpu_custom_call.1} parent=27 // pred_check_branch
          %239 = sbr.rel (%p237) target = $region36
        $region35: #{tpu_custom_call.1} parent=27 // pred_region
          %s240 = sand.u32 %s20, 1
          %s241 = scalar_lea.sflag [#allocation6], %s240
          %s242 = sand.u32 %s70, 1
          %s243 = smul.addr %s242, 32
          %s244 = scalar_lea.vmem [#allocation5], %s243
          %s245 = smul.u32 2, %s27
          %s246 = smul.u32 2, %s28
          %s248 = ssub.s32 512, 512
          %249 = vsyncadd %s241, %s248
          %s250 = smul.addr %s245, 2
          %s251 = sadd.s32 %s246, %s250
          %s252 = smul.addr %s251, 128
          %s253 = scalar_lea.hbm %s1, %s252
          %s254 = sshll.u32 %s244, 4
          %s255 = int_to_ptr.vmem [resolvable:$true] %s254
          %260 = dma.hbm_to_vmem [thread:$0]  %s253, 512, %s255, %s241, 128, 128, 8
        $region36: #{tpu_custom_call.1} parent=27 // pred_fallthru
          _
      $region28: #{tpu_custom_call.1} parent=5 // pred_fallthru
        _
      %p261 = scmp.le.s32.totalorder 1, %s20
      %p262 = scmp.lt.s32.totalorder %s20, 3
      %p263 = pnand %p261, %p262
      %p264 = pneg %p263
      // Predicated region
      $region37: #{tpu_custom_call.1} parent=5 // pred_check
        _
      $region38: #{tpu_custom_call.1} parent=5 // pred_check_branch
        %266 = sbr.rel (%p263) target = $region40
      $region39: #{tpu_custom_call.1} parent=5 // pred_region
        %s267 = ssub.s32 %s20, 1
        %s268 = sand.u32 %s45, 1
        %s269 = scalar_lea.sflag [#allocation3], %s268
        %s270 = sand.u32 %s45, 1
        %s271 = smul.addr %s270, 32
        %s272 = scalar_lea.vmem [#allocation2], %s271
        // Predicated region
        $region41: #{tpu_custom_call.1} parent=39 // pred_check
          %p273 = pneg %p58
        $region42: #{tpu_custom_call.1} parent=39 // pred_check_branch
          %275 = sbr.rel (%p273) target = $region44
        $region43: #{tpu_custom_call.1} parent=39 // pred_region
          %276 = dma.done %s269, 512
        $region44: #{tpu_custom_call.1} parent=39 // pred_fallthru
          _
        %s277 = sand.u32 %s25, 1
        %s278 = scalar_lea.sflag [#allocation6], %s277
        %s279 = sand.u32 %s73, 1
        %s280 = smul.addr %s279, 32
        %s281 = scalar_lea.vmem [#allocation5], %s280
        // Predicated region
        $region45: #{tpu_custom_call.1} parent=39 // pred_check
          %p282 = pneg %p86
        $region46: #{tpu_custom_call.1} parent=39 // pred_check_branch
          %284 = sbr.rel (%p282) target = $region48
        $region47: #{tpu_custom_call.1} parent=39 // pred_region
          %285 = dma.done %s278, 512
        $region48: #{tpu_custom_call.1} parent=39 // pred_fallthru
          _
        // Predicated region
        $region49: #{tpu_custom_call.1} parent=39 // pred_check
          %p286 = pneg %p107
        $region50: #{tpu_custom_call.1} parent=39 // pred_check_branch
          %288 = sbr.rel (%p286) target = $region52
        $region51: #{tpu_custom_call.1} parent=39 // pred_region
          %289 = dma.done [#allocation6], 512
        $region52: #{tpu_custom_call.1} parent=39 // pred_fallthru
          _
        %s290 = sand.u32 %s45, 1
        %s291 = scalar_lea.sflag [#allocation3], %s290
        %s292 = sand.u32 %s45, 1
        %s293 = smul.addr %s292, 32
        %s294 = scalar_lea.vmem [#allocation2], %s293
        %p295 = pneg %p58
        %p296 = pneg %p55
        %s297 = sand.u32 %s25, 1
        %s298 = scalar_lea.sflag [#allocation6], %s297
        %s299 = sand.u32 %s73, 1
        %s300 = smul.addr %s299, 32
        %s301 = scalar_lea.vmem [#allocation5], %s300
        %p302 = pneg %p86
        %p303 = pneg %p83
        %p304 = pneg %p107
        %p305 = pneg %p104
        %p306 = pneg %p128
        %p307 = pneg %p125
        %p308 = pneg %p149
        %p309 = pneg %p146
        %p310 = pneg %p177
        %p311 = pneg %p174
        %s312 = sand.u32 %s164, 1
        %s313 = scalar_lea.sflag [#allocation4], %s312
        %s314 = sand.u32 %s164, 1
        %s315 = smul.addr %s314, 32
        %s316 = scalar_lea.vmem [#allocation8], %s315
        %s317 = smul.u32 2, %s29
        %s318 = smul.u32 2, %s29
        %s319 = smul.u32 2, %s30
        %s320 = smul.u32 2, %s29
        %s321 = smul.u32 2, %s30
        %v322 = vld [vmem:[%s272] sm:$0xff]
        %v323 = vld [vmem:[%s272 + $0x8] sm:$0xff]
        %v324 = vld [vmem:[%s272 + $0x10] sm:$0xff]
        %v325 = vld [vmem:[%s272 + $0x18] sm:$0xff]
        %v326 = vld [vmem:[%s281] sm:$0xff]
        %v327 = vld [vmem:[%s281 + $0x8] sm:$0xff]
        %v328 = vld [vmem:[%s281 + $0x10] sm:$0xff]
        %v329 = vld [vmem:[%s281 + $0x18] sm:$0xff]
        %v330 = vld [vmem:[#allocation7] sm:$0xff]
        %v331 = vld [vmem:[#allocation7 + $0x8] sm:$0xff]
        %v332 = vld [vmem:[#allocation7 + $0x10] sm:$0xff]
        %v333 = vld [vmem:[#allocation7 + $0x18] sm:$0xff]
        %v334 = vld [vmem:[%s3] sm:$0x1]
        %vm335 = vcmask 130048
        %v337 = vsel %vm335, %v326, 0
        %v340 = vsel %vm335, %v327, 0
        %342 = vmatprep.subr.mxu0 0.0
        %343 = vmatpush1.msra.mxu0 %v322
        %344 = vmatprep.subr.mxu0 0.0
        %345 = vmatpush1.msra.mxu0 %v323
        %346 = vmatprep.subr.mxu0 0.0
        %347 = vmatpush1.msra.mxu0 0.0
        %348 = vmatprep.subr.mxu0 0.0
        %349 = vmatpush1.msra.mxu0 0.0
        %350 = vmatprep.subr.mxu0 0.0
        %351 = vmatpush1.msra.mxu0 0.0
        %352 = vmatprep.subr.mxu0 0.0
        %353 = vmatpush1.msra.mxu0 0.0
        %354 = vmatprep.subr.mxu0 0.0
        %355 = vmatpush1.msra.mxu0 0.0
        %356 = vmatprep.subr.mxu0 0.0
        %357 = vmatpush1.msra.mxu0 0.0
        %358 = vmatprep.subr.mxu0 0.0
        %359 = vmatpush1.msra.mxu0 0.0
        %360 = vmatprep.subr.mxu0 0.0
        %361 = vmatpush1.msra.mxu0 0.0
        %362 = vmatprep.subr.mxu0 0.0
        %363 = vmatpush1.msra.mxu0 0.0
        %364 = vmatprep.subr.mxu0 0.0
        %365 = vmatpush1.msra.mxu0 0.0
        %366 = vmatprep.subr.mxu0 0.0
        %367 = vmatpush1.msra.mxu0 0.0
        %368 = vmatprep.subr.mxu0 0.0
        %369 = vmatpush1.msra.mxu0 0.0
        %370 = vmatprep.subr.mxu0 0.0
        %371 = vmatpush1.msra.mxu0 0.0
        %372 = vmatprep.subr.mxu0 0.0
        %373 = vmatpush1.msra.mxu0 0.0
        %374 = vmatprep.subr.mxu0 0.0
        %375 = vmatpush1.msra.mxu0 0.0
        %376 = vmatprep.subr.mxu0 0.0
        %377 = vmatpush1.msra.mxu0 0.0
        %378 = vmatprep.subr.mxu0 0.0
        %379 = vmatpush1.msra.mxu0 0.0
        %380 = vmatprep.subr.mxu0 0.0
        %381 = vmatpush1.msra.mxu0 0.0
        %382 = vmatprep.subr.mxu0 0.0
        %383 = vmatpush1.msra.mxu0 0.0
        %384 = vmatprep.subr.mxu0 0.0
        %385 = vmatpush1.msra.mxu0 0.0
        %386 = vmatprep.subr.mxu0 0.0
        %387 = vmatpush1.msra.mxu0 0.0
        %388 = vmatprep.subr.mxu0 0.0
        %389 = vmatpush1.msra.mxu0 0.0
        %390 = vmatprep.subr.mxu0 0.0
        %391 = vmatpush1.msra.mxu0 0.0
        %392 = vmatprep.subr.mxu0 0.0
        %393 = vmatpush1.msra.mxu0 0.0
        %394 = vmatprep.subr.mxu0 0.0
        %395 = vmatpush1.msra.mxu0 0.0
        %396 = vmatprep.subr.mxu0 0.0
        %397 = vmatpush1.msra.mxu0 0.0
        %398 = vmatprep.subr.mxu0 0.0
        %399 = vmatpush1.msra.mxu0 0.0
        %400 = vmatprep.subr.mxu0 0.0
        %401 = vmatpush1.msra.mxu0 0.0
        %402 = vmatprep.subr.mxu0 0.0
        %403 = vmatpush1.msra.mxu0 0.0
        %404 = vmatprep.subr.mxu0 0.0
        %405 = vmatpush1.msra.mxu0 0.0
        %406 = vmatprep.mubr.f32.mxu0 0.0
        %407 = vmatmul.mubr.f32.gmra.mrb[0].mxu0 %v337
        %v408 = vpop.f32.mrb[0].mxu0
        %v409 = vadd.f32 0.0, %v408
        %v410 = vpop.f32.mrb[0].mxu0
        %411 = vmatprep.mubr.f32.mxu0 0.0
        %412 = vmatmul.mubr.f32.gmra.mrb[0].mxu0 %v340
        %v413 = vpop.f32.mrb[0].mxu0
        %v414 = vadd.f32 0.0, %v413
        %v415 = vpop.f32.mrb[0].mxu0
        %416 = vdwg.mxu0
        %v418 = vsel %vm335, %v328, 0
        %v421 = vsel %vm335, %v329, 0
        %423 = vmatprep.subr.mxu0 0.0
        %424 = vmatpush1.msra.mxu0 %v324
        %425 = vmatprep.subr.mxu0 0.0
        %426 = vmatpush1.msra.mxu0 %v325
        %427 = vmatprep.subr.mxu0 0.0
        %428 = vmatpush1.msra.mxu0 0.0
        %429 = vmatprep.subr.mxu0 0.0
        %430 = vmatpush1.msra.mxu0 0.0
        %431 = vmatprep.subr.mxu0 0.0
        %432 = vmatpush1.msra.mxu0 0.0
        %433 = vmatprep.subr.mxu0 0.0
        %434 = vmatpush1.msra.mxu0 0.0
        %435 = vmatprep.subr.mxu0 0.0
        %436 = vmatpush1.msra.mxu0 0.0
        %437 = vmatprep.subr.mxu0 0.0
        %438 = vmatpush1.msra.mxu0 0.0
        %439 = vmatprep.subr.mxu0 0.0
        %440 = vmatpush1.msra.mxu0 0.0
        %441 = vmatprep.subr.mxu0 0.0
        %442 = vmatpush1.msra.mxu0 0.0
        %443 = vmatprep.subr.mxu0 0.0
        %444 = vmatpush1.msra.mxu0 0.0
        %445 = vmatprep.subr.mxu0 0.0
        %446 = vmatpush1.msra.mxu0 0.0
        %447 = vmatprep.subr.mxu0 0.0
        %448 = vmatpush1.msra.mxu0 0.0
        %449 = vmatprep.subr.mxu0 0.0
        %450 = vmatpush1.msra.mxu0 0.0
        %451 = vmatprep.subr.mxu0 0.0
        %452 = vmatpush1.msra.mxu0 0.0
        %453 = vmatprep.subr.mxu0 0.0
        %454 = vmatpush1.msra.mxu0 0.0
        %455 = vmatprep.subr.mxu0 0.0
        %456 = vmatpush1.msra.mxu0 0.0
        %457 = vmatprep.subr.mxu0 0.0
        %458 = vmatpush1.msra.mxu0 0.0
        %459 = vmatprep.subr.mxu0 0.0
        %460 = vmatpush1.msra.mxu0 0.0
        %461 = vmatprep.subr.mxu0 0.0
        %462 = vmatpush1.msra.mxu0 0.0
        %463 = vmatprep.subr.mxu0 0.0
        %464 = vmatpush1.msra.mxu0 0.0
        %465 = vmatprep.subr.mxu0 0.0
        %466 = vmatpush1.msra.mxu0 0.0
        %467 = vmatprep.subr.mxu0 0.0
        %468 = vmatpush1.msra.mxu0 0.0
        %469 = vmatprep.subr.mxu0 0.0
        %470 = vmatpush1.msra.mxu0 0.0
        %471 = vmatprep.subr.mxu0 0.0
        %472 = vmatpush1.msra.mxu0 0.0
        %473 = vmatprep.subr.mxu0 0.0
        %474 = vmatpush1.msra.mxu0 0.0
        %475 = vmatprep.subr.mxu0 0.0
        %476 = vmatpush1.msra.mxu0 0.0
        %477 = vmatprep.subr.mxu0 0.0
        %478 = vmatpush1.msra.mxu0 0.0
        %479 = vmatprep.subr.mxu0 0.0
        %480 = vmatpush1.msra.mxu0 0.0
        %481 = vmatprep.subr.mxu0 0.0
        %482 = vmatpush1.msra.mxu0 0.0
        %483 = vmatprep.subr.mxu0 0.0
        %484 = vmatpush1.msra.mxu0 0.0
        %485 = vmatprep.subr.mxu0 0.0
        %486 = vmatpush1.msra.mxu0 0.0
        %487 = vmatprep.mubr.f32.mxu0 0.0
        %488 = vmatmul.mubr.f32.gmra.mrb[0].mxu0 %v418
        %v489 = vpop.f32.mrb[0].mxu0
        %v490 = vadd.f32 0.0, %v489
        %v491 = vpop.f32.mrb[0].mxu0
        %492 = vmatprep.mubr.f32.mxu0 0.0
        %493 = vmatmul.mubr.f32.gmra.mrb[0].mxu0 %v421
        %v494 = vpop.f32.mrb[0].mxu0
        %v495 = vadd.f32 0.0, %v494
        %v496 = vpop.f32.mrb[0].mxu0
        %497 = vdwg.mxu0
        %v498 = vsel %vm335, %v326, 0.0
        %499 = vadd.xlane.f32.xlu0 %v498
        %v500 = vpop.xlane.xlu0 %499
        %v501 = vsel %vm335, %v327, 0.0
        %502 = vadd.xlane.f32.xlu0 %v501
        %v503 = vpop.xlane.xlu0 %502
        %v504 = vsel %vm335, %v328, 0.0
        %505 = vadd.xlane.f32.xlu0 %v504
        %v506 = vpop.xlane.xlu0 %505
        %v507 = vsel %vm335, %v329, 0.0
        %508 = vadd.xlane.f32.xlu0 %v507
        %v509 = vpop.xlane.xlu0 %508
        %v511 = vlaneseq
        %v512 = vshrl.u32 %v511, 7
        %v513 = vsub.s32 0, %v512
        %v514 = vrot.slane %v334, %v513
        %v516 = vmul.f32 %v500, %v514
        %v517 = vmul.f32 %v503, %v514
        %v518 = vmul.f32 %v506, %v514
        %v519 = vmul.f32 %v509, %v514
        %vm520 = vcmask 261120
        %v522 = vsel %vm520, %v409, 0
        %v525 = vsel %vm520, %v414, 0
        %v528 = vsel %vm520, %v490, 0
        %v531 = vsel %vm520, %v495, 0
        %533 = vmatprep.subr.mxu0 0.0
        %534 = vmatpush1.msra.mxu0 %v330
        %535 = vmatprep.subr.mxu0 0.0
        %536 = vmatpush1.msra.mxu0 %v331
        %537 = vmatprep.subr.mxu0 0.0
        %538 = vmatpush1.msra.mxu0 %v332
        %539 = vmatprep.subr.mxu0 0.0
        %540 = vmatpush1.msra.mxu0 %v333
        %541 = vmatprep.subr.mxu0 0.0
        %542 = vmatpush1.msra.mxu0 0.0
        %543 = vmatprep.subr.mxu0 0.0
        %544 = vmatpush1.msra.mxu0 0.0
        %545 = vmatprep.subr.mxu0 0.0
        %546 = vmatpush1.msra.mxu0 0.0
        %547 = vmatprep.subr.mxu0 0.0
        %548 = vmatpush1.msra.mxu0 0.0
        %549 = vmatprep.subr.mxu0 0.0
        %550 = vmatpush1.msra.mxu0 0.0
        %551 = vmatprep.subr.mxu0 0.0
        %552 = vmatpush1.msra.mxu0 0.0
        %553 = vmatprep.subr.mxu0 0.0
        %554 = vmatpush1.msra.mxu0 0.0
        %555 = vmatprep.subr.mxu0 0.0
        %556 = vmatpush1.msra.mxu0 0.0
        %557 = vmatprep.subr.mxu0 0.0
        %558 = vmatpush1.msra.mxu0 0.0
        %559 = vmatprep.subr.mxu0 0.0
        %560 = vmatpush1.msra.mxu0 0.0
        %561 = vmatprep.subr.mxu0 0.0
        %562 = vmatpush1.msra.mxu0 0.0
        %563 = vmatprep.subr.mxu0 0.0
        %564 = vmatpush1.msra.mxu0 0.0
        %565 = vmatprep.subr.mxu0 0.0
        %566 = vmatpush1.msra.mxu0 0.0
        %567 = vmatprep.subr.mxu0 0.0
        %568 = vmatpush1.msra.mxu0 0.0
        %569 = vmatprep.subr.mxu0 0.0
        %570 = vmatpush1.msra.mxu0 0.0
        %571 = vmatprep.subr.mxu0 0.0
        %572 = vmatpush1.msra.mxu0 0.0
        %573 = vmatprep.subr.mxu0 0.0
        %574 = vmatpush1.msra.mxu0 0.0
        %575 = vmatprep.subr.mxu0 0.0
        %576 = vmatpush1.msra.mxu0 0.0
        %577 = vmatprep.subr.mxu0 0.0
        %578 = vmatpush1.msra.mxu0 0.0
        %579 = vmatprep.subr.mxu0 0.0
        %580 = vmatpush1.msra.mxu0 0.0
        %581 = vmatprep.subr.mxu0 0.0
        %582 = vmatpush1.msra.mxu0 0.0
        %583 = vmatprep.subr.mxu0 0.0
        %584 = vmatpush1.msra.mxu0 0.0
        %585 = vmatprep.subr.mxu0 0.0
        %586 = vmatpush1.msra.mxu0 0.0
        %587 = vmatprep.subr.mxu0 0.0
        %588 = vmatpush1.msra.mxu0 0.0
        %589 = vmatprep.subr.mxu0 0.0
        %590 = vmatpush1.msra.mxu0 0.0
        %591 = vmatprep.subr.mxu0 0.0
        %592 = vmatpush1.msra.mxu0 0.0
        %593 = vmatprep.subr.mxu0 0.0
        %594 = vmatpush1.msra.mxu0 0.0
        %595 = vmatprep.subr.mxu0 0.0
        %596 = vmatpush1.msra.mxu0 0.0
        %597 = vmatprep.mubr.f32.mxu0 0.0
        %598 = vmatmul.mubr.f32.gmra.mrb[0].mxu0 %v522
        %v599 = vpop.f32.mrb[0].mxu0
        %v600 = vadd.f32 %v516, %v599
        %v601 = vpop.f32.mrb[0].mxu0
        %602 = vmatprep.mubr.f32.mxu0 0.0
        %603 = vmatmul.mubr.f32.gmra.mrb[0].mxu0 %v525
        %v604 = vpop.f32.mrb[0].mxu0
        %v605 = vadd.f32 %v517, %v604
        %v606 = vpop.f32.mrb[0].mxu0
        %607 = vmatprep.mubr.f32.mxu0 0.0
        %608 = vmatmul.mubr.f32.gmra.mrb[0].mxu0 %v528
        %v609 = vpop.f32.mrb[0].mxu0
        %v610 = vadd.f32 %v518, %v609
        %v611 = vpop.f32.mrb[0].mxu0
        %612 = vmatprep.mubr.f32.mxu0 0.0
        %613 = vmatmul.mubr.f32.gmra.mrb[0].mxu0 %v531
        %v614 = vpop.f32.mrb[0].mxu0
        %v615 = vadd.f32 %v519, %v614
        %v616 = vpop.f32.mrb[0].mxu0
        %617 = vdwg.mxu0
        %v618 = vld [vmem:[%s4] sm:$0x1]
        %v620 = vlaneseq
        %v621 = vshrl.u32 %v620, 7
        %v622 = vsub.s32 0, %v621
        %v623 = vrot.slane %v618, %v622
        %v625 = vadd.f32 %v600, %v623
        %v626 = vadd.f32 %v605, %v623
        %v627 = vadd.f32 %v610, %v623
        %v628 = vadd.f32 %v615, %v623
        %629 = vst.msk [vmem:[%s316] sm:$0xff] %vm520, %v625
        %630 = vst.msk [vmem:[%s316 + $0x8] sm:$0xff] %vm520, %v626
        %631 = vst.msk [vmem:[%s316 + $0x10] sm:$0xff] %vm520, %v627
        %632 = vst.msk [vmem:[%s316 + $0x18] sm:$0xff] %vm520, %v628
        %s633 = sand.u32 %s164, 1
        %s634 = scalar_lea.sflag [#allocation4], %s633
        %s635 = sand.u32 %s164, 1
        %s636 = smul.addr %s635, 32
        %s637 = scalar_lea.vmem [#allocation8], %s636
        // Predicated region
        $region53: #{tpu_custom_call.1} parent=39 // pred_check
          %p638 = pneg %p174
        $region54: #{tpu_custom_call.1} parent=39 // pred_check_branch
          %640 = sbr.rel (%p638) target = $region56
        $region55: #{tpu_custom_call.1} parent=39 // pred_region
          %s641 = smul.u32 2, %s29
          %s642 = smul.u32 2, %s30
          %s644 = ssub.s32 512, 512
          %645 = vsyncadd %s634, %s644
          %s646 = smul.addr %s641, 2
          %s647 = sadd.s32 %s642, %s646
          %s648 = smul.addr %s647, 128
          %s649 = scalar_lea.hbm %s5, %s648
          %s650 = sshll.u32 %s637, 4
          %s651 = int_to_ptr.vmem [resolvable:$true] %s650
          %656 = dma.vmem_to_hbm [thread:$0]  %s651, 512, %s649, %s634, 128, 128, 8
        $region56: #{tpu_custom_call.1} parent=39 // pred_fallthru
          _
      $region40: #{tpu_custom_call.1} parent=5 // pred_fallthru
        _
      %p657 = scmp.le.s32.totalorder 2, %s20
      // Predicated region
      $region57: #{tpu_custom_call.1} parent=5 // pred_check
        %p658 = pneg %p657
      $region58: #{tpu_custom_call.1} parent=5 // pred_check_branch
        %660 = sbr.rel (%p658) target = $region60
      $region59: #{tpu_custom_call.1} parent=5 // pred_region
        %s661 = ssub.s32 %s20, 2
        // Predicated region
        $region61: #{tpu_custom_call.1} parent=59 // pred_check
          %p662 = pneg %p180
        $region62: #{tpu_custom_call.1} parent=59 // pred_check_branch
          %664 = sbr.rel (%p662) target = $region64
        $region63: #{tpu_custom_call.1} parent=59 // pred_region
          %s665 = sand.u32 %s165, 1
          %s666 = scalar_lea.sflag [#allocation4], %s665
          %s667 = sand.u32 %s165, 1
          %s668 = smul.addr %s667, 32
          %s669 = scalar_lea.vmem [#allocation8], %s668
          %670 = dma.done %s666, 512
        $region64: #{tpu_custom_call.1} parent=59 // pred_fallthru
          _
      $region60: #{tpu_custom_call.1} parent=5 // pred_fallthru
        _
    $region6: #{tpu_custom_call.1} parent=1 // loop_footer
      %s24 = sadd.s32 1, %s20
    $region7: #{tpu_custom_call.1} parent=1 // loop_footer_branch
      %19 = sbr.rel target = $region3
    $region8: #{tpu_custom_call.1} parent=1 // loop_exit
      _
    %671 = vsyncpa [#allocation3], 1
    %s672 = scalar_lea.sflag [#allocation3], 1
    %673 = vsyncpa %s672, 1
    %674 = vsyncpa [#allocation6], 1
    %s675 = scalar_lea.sflag [#allocation6], 1
    %676 = vsyncpa %s675, 1
    %677 = vsyncpa [#allocation4], 1
    %s678 = scalar_lea.sflag [#allocation4], 1
    %679 = vsyncpa %s678, 1

</llo_original>
